<compile_context>
chip_gen: v5e
topology: v5e:2x2
jax: 0.10.0
libtpu: 0.0.40
codegen_flags: <defaults>
</compile_context>

<pallas_src>
import jax
import jax.numpy as jnp
from jax.experimental import pallas as pl
from jax.experimental.pallas import tpu as pltpu

_MAX_LANES = 2048                       # cap on lane width (multiple of 128)
_FALLBACK_LANES = 1024                  # pad-path lane width
_TARGET_BLOCK_BYTES = 2 * 1024 * 1024   # ~2 MiB/block; ~8 MiB double-buffered in+out


def _h_sigmoid_kernel(x_ref, o_ref):
    x = x_ref[...]
    three = jnp.asarray(3.0, x.dtype)
    zero = jnp.asarray(0.0, x.dtype)
    six = jnp.asarray(6.0, x.dtype)
    # relu6(x + 3) / 6
    o_ref[...] = jnp.clip(x + three, zero, six) / six


def _round_up(v: int, m: int) -> int:
    return ((v + m - 1) // m) * m


def _pick_lanes(total: int) -> int | None:
    """Largest multiple of 128 (<= _MAX_LANES) that divides `total`."""
    for k in range(_MAX_LANES // 128, 0, -1):
        lanes = 128 * k
        if total % lanes == 0:
            return lanes
    return None


def _run_2d(x2d: jax.Array, rows: int, lanes: int, dtype) -> jax.Array:
    itemsize = jnp.dtype(dtype).itemsize
    # Dtype-aware sublane multiple: 8 (f32) / 16 (bf16) / 32 (int8/fp8-sized).
    sub = 8 * max(1, 4 // itemsize)

    rows_per_block = max(
        sub, (_TARGET_BLOCK_BYTES // (lanes * itemsize)) // sub * sub
    )

    if rows <= rows_per_block:
        if rows >= 2 * sub:
            # Split into >= 2 blocks so both v7x TensorCores get work.
            tile_rows = _round_up(pl.cdiv(rows, 2), sub)
        else:
            tile_rows = rows  # tiny input: full extent (always legal)
    else:
        tile_rows = rows_per_block
        # Prefer an even block count for v7x TC load balance (best effort).
        n_blocks = pl.cdiv(rows, tile_rows)
        if n_blocks > 1 and n_blocks % 2 == 1:
            cand = _round_up(pl.cdiv(rows, n_blocks + 1), sub)
            if cand >= sub and pl.cdiv(rows, cand) % 2 == 0:
                tile_rows = cand

    grid = (pl.cdiv(rows, tile_rows),)

    return pl.pallas_call(
        _h_sigmoid_kernel,
        out_shape=jax.ShapeDtypeStruct((rows, lanes), dtype),
        grid_spec=pltpu.PrefetchScalarGridSpec(
            num_scalar_prefetch=0,
            grid=grid,
            in_specs=[pl.BlockSpec((tile_rows, lanes), lambda i: (i, 0))],
            out_specs=pl.BlockSpec((tile_rows, lanes), lambda i: (i, 0)),
        ),
        compiler_params=pltpu.CompilerParams(
            dimension_semantics=("parallel",),
        ),
    )(x2d)


@jax.jit
def h_sigmoid(x: jax.Array) -> jax.Array:
    """Applies h_sigmoid (relu6(x+3)/6) elementwise to any-shape float array."""
    orig_shape = x.shape
    dtype = x.dtype
    if not jnp.issubdtype(dtype, jnp.floating):
        raise TypeError(f"h_sigmoid expects a floating dtype, got {dtype}")

    total = x.size
    flat = x.reshape(-1)

    lanes = _pick_lanes(total)
    if lanes is not None:
        # Copy-free fast path: pure reshape in, pure reshape out.
        rows = total // lanes
        out2d = _run_2d(flat.reshape(rows, lanes), rows, lanes, dtype)
        return out2d.reshape(orig_shape)

    # Rare ragged fallback: pad only to a multiple of 128*? lanes (1024 here).
    lanes = _FALLBACK_LANES
    padded_total = _round_up(total, lanes)
    flat = jnp.pad(flat, (0, padded_total - total))
    rows = padded_total // lanes
    out2d = _run_2d(flat.reshape(rows, lanes), rows, lanes, dtype)
    return out2d.reshape(-1)[:total].reshape(orig_shape)


if __name__ == "__main__":
    key = jax.random.PRNGKey(0)
    # NCHW activation map consistent with preprocessing-VGG usage.
    x = jax.random.normal(key, (2, 4, 16, 16), dtype=jnp.float32) * 4.0

    y = jax.block_until_ready(h_sigmoid(x))

    # Pure-JAX reference check.
    y_ref = jnp.clip(x + 3.0, 0.0, 6.0) / 6.0
    assert y.shape == x.shape and y.dtype == x.dtype
    assert jnp.max(jnp.abs(y - y_ref)) < 1e-6

    print("KERNEL_OK")
</pallas_src>

<mosaic_0001>
module attributes {stable_mosaic.version = 11 : i64} {
  func.func @_h_sigmoid_kernel(%arg0: i32, %arg1: memref<1x2048xf32, #tpu.memory_space<vmem>>, %arg2: memref<1x2048xf32, #tpu.memory_space<vmem>>) attributes {dimension_semantics = [#tpu.dimension_semantics<parallel>], iteration_bounds = array<i64: 1>, scalar_prefetch = 0 : i64, scratch_operands = 0 : i64, tpu.core_type = #tpu.core_type<tc>, window_params = [{transform_indices = @transform_0, window_bounds = array<i64: 1, 2048>}, {transform_indices = @transform_1, window_bounds = array<i64: 1, 2048>}]} {
    %c0 = arith.constant 0 : index
    %c0_0 = arith.constant 0 : index
    %0 = vector.load %arg1[%c0, %c0_0] : memref<1x2048xf32, #tpu.memory_space<vmem>>, vector<1x2048xf32>
    %cst = arith.constant 3.000000e+00 : f32
    %1 = vector.broadcast %cst : f32 to vector<1x2048xf32>
    %2 = arith.addf %0, %1 : vector<1x2048xf32>
    %cst_1 = arith.constant 0.000000e+00 : f32
    %cst_2 = arith.constant 6.000000e+00 : f32
    %3 = vector.broadcast %cst_1 : f32 to vector<1x2048xf32>
    %4 = arith.maximumf %3, %2 : vector<1x2048xf32>
    %5 = vector.broadcast %cst_2 : f32 to vector<1x2048xf32>
    %6 = arith.minimumf %5, %4 : vector<1x2048xf32>
    %cst_3 = arith.constant 6.000000e+00 : f32
    %7 = vector.broadcast %cst_3 : f32 to vector<1x2048xf32>
    %8 = arith.divf %6, %7 : vector<1x2048xf32>
    %c0_4 = arith.constant 0 : index
    %c0_5 = arith.constant 0 : index
    %9 = vector.load %arg2[%c0_4, %c0_5] : memref<1x2048xf32, #tpu.memory_space<vmem>>, vector<1x2048xf32>
    tpu.vector_store %arg2[%c0_4, %c0_5], %8 {strides = array<i32>} : memref<1x2048xf32, #tpu.memory_space<vmem>>, vector<1x2048xf32>,
    return
  }
  func.func @transform_0(%arg0: i32) -> (i32, i32) {
    %c0_i32 = arith.constant 0 : i32
    %c0_i32_0 = arith.constant 0 : i32
    return %arg0, %c0_i32 : i32, i32
  }
  func.func @transform_1(%arg0: i32) -> (i32, i32) {
    %c0_i32 = arith.constant 0 : i32
    %c0_i32_0 = arith.constant 0 : i32
    return %arg0, %c0_i32 : i32, i32
  }
}

</mosaic_0001>

<llo_original>
// kernel: h_sigmoid.1
$region0: #{h_sigmoid.1}
  #allocation0 [shape = 'u32[]', space=smem, size = 0x4, offset = 0x4, fixed_abs, tag = 'smem constant byte address 0x4 - core index']
  #allocation1 [shape = 'u32[72,128]{1,0:T(1,128)}', space=vmem, size = 0x9000, scoped, tag = 'internal scratch']
  %s0 = inlined_call_operand.vmem [shape: f32[1,2048], index: 0, kind: input, shape index: {}]
  %s1 = inlined_call_operand.vmem [shape: f32[1,2048], index: 1, kind: output, shape index: {}]
  %s2 = sld [smem:[#allocation0]]
  $region14: #{h_sigmoid.1} parent=0
    _
  %s4 = ssub.s32 1, %s2
  %s5 = scalar_select 0, %s4, %s2
  // Predicated region
  $region2: #{h_sigmoid.1} parent=0 // pred_check
    _
  $region3: #{h_sigmoid.1} parent=0 // pred_check_branch
    %7 = sbr.rel (0) target = $region5
  $region4: #{h_sigmoid.1} parent=0 // pred_region
    _
  $region5: #{h_sigmoid.1} parent=0 // pred_fallthru
    _
  %v8 = vld [vmem:[%s0] sm:$0xff]
  %v9 = vld [vmem:[%s0 + $0x8] sm:$0xff]
  %v10 = vadd.f32 %v8, 3.0
  %v11 = vadd.f32 %v9, 3.0
  %v12 = vmax.f32 %v10, 0.0
  %v13 = vmax.f32 %v11, 0.0
  %v14 = vmin.f32 %v12, 6.0
  %v15 = vmin.f32 %v13, 6.0
  %v16 = vrcp.pop 6.0
  %v17 = vmul.f32 6.0, %v16
  %v18 = vsub.f32 1.0, %v17
  %v19 = vmul.f32 %v16, %v18
  %v20 = vadd.f32 %v16, %v19
  %vm21 = vweird.f32 %v16
  %v22 = vsel %vm21, %v16, %v20
  %v23 = vmul.f32 %v14, %v22
  %v24 = vmul.f32 %v15, %v22
  %25 = vst [vmem:[%s1] sm:$0xff] %v23
  %26 = vst [vmem:[%s1 + $0x8] sm:$0xff] %v24
  // Predicated region
  $region6: #{h_sigmoid.1} parent=0 // pred_check
    _
  $region7: #{h_sigmoid.1} parent=0 // pred_check_branch
    %28 = sbr.rel (0) target = $region9
  $region8: #{h_sigmoid.1} parent=0 // pred_region
    _
  $region9: #{h_sigmoid.1} parent=0 // pred_fallthru
    _
  // Predicated region
  $region10: #{h_sigmoid.1} parent=0 // pred_check
    _
  $region11: #{h_sigmoid.1} parent=0 // pred_check_branch
    %30 = sbr.rel (0) target = $region13
  $region12: #{h_sigmoid.1} parent=0 // pred_region
    _
  $region13: #{h_sigmoid.1} parent=0 // pred_fallthru
    _

</llo_original>
